<compile_context>
chip_gen: v5e
topology: v5e:2x2
jax: 0.10.0
libtpu: 0.0.40
codegen_flags: <defaults>
</compile_context>

<pallas_src>
import functools

import jax
import jax.numpy as jnp
from jax.experimental import pallas as pl
from jax.experimental.pallas import tpu as pltpu


def _focal_loss_kernel(logits_ref, tgt_ref, alpha_ref, out_ref, *,
                       gamma, ignore_index, n_tokens, tile_lanes):
    """One grid step: (C, TL) class-major logits tile -> (loss_sum, valid_count)."""
    i = pl.program_id(0)

    x = logits_ref[...].astype(jnp.float32)        # (C, TL)  classes x tokens
    t = tgt_ref[...]                               # (1, TL)  int32 targets
    alpha = alpha_ref[...]                         # (C, 1)   per-class weights

    # Token (lane) validity.  The range check is only emitted when the last
    # tile is ragged (trace-time constant), saving VALU work in the aligned
    # case.
    valid = t != ignore_index                                        # (1, TL)
    if n_tokens % tile_lanes != 0:
        col = jax.lax.broadcasted_iota(jnp.int32, t.shape, 1)
        valid = valid & (col < (n_tokens - i * tile_lanes))

    # One-hot of the target class along the sublane (class) axis.
    class_ids = jax.lax.broadcasted_iota(jnp.int32, x.shape, 0)      # (C, TL)
    onehot = class_ids == t                                          # (C, TL)

    # Numerically stable log-softmax over classes (sublane reduces -> XLU,
    # exp/log -> EUP; both off the VALU critical slot).
    m = jnp.max(x, axis=0, keepdims=True)                            # (1, TL)
    ex = jnp.exp(x - m)
    logsumexp = m + jnp.log(jnp.sum(ex, axis=0, keepdims=True))      # (1, TL)

    x_t = jnp.sum(jnp.where(onehot, x, 0.0), axis=0, keepdims=True)          # (1, TL)
    alpha_w = jnp.sum(jnp.where(onehot, alpha, 0.0), axis=0, keepdims=True)  # (1, TL)

    log_pt = x_t - logsumexp                                         # <= 0
    pt = jnp.exp(log_pt)                                             # <= 1

    # gamma is a trace-time constant; specialize the common integer cases so
    # the focal weight is a single multiply instead of exp(gamma*log(w)).
    w = 1.0 - pt
    if gamma == 2.0:
        focal_w = w * w
    elif gamma == 1.0:
        focal_w = w
    elif gamma == 0.0:
        focal_w = jnp.ones_like(w)
    else:
        focal_w = jnp.power(jnp.maximum(w, 0.0), gamma)

    # Select (not multiply) so garbage lanes cannot propagate NaN/inf.
    loss = jnp.where(valid, focal_w * alpha_w * (-log_pt), 0.0)      # (1, TL)

    # Single (1, 2, 1) store per step: row 0 = loss sum, row 1 = valid count.
    stacked = jnp.concatenate([loss, valid.astype(jnp.float32)], axis=0)  # (2, TL)
    out_ref[...] = jnp.sum(stacked, axis=1, keepdims=True).reshape(1, 2, 1)
    # TODO(synk): if bundle dumps show the VALU slot saturating on v6e/v7x,
    # relayout the (1, TL) row chain to (8, TL/8) for full sublane density.


def _pick_tile_and_vmem(n_tokens, num_classes, itemsize):
    """Token-tile (lane) width sized against the padded, double-buffered VMEM
    footprint, plus a matching vmem_limit_bytes for the compiler."""
    # Sub-32-bit dtypes pack along sublanes: rows pad to 8 * (4 // itemsize).
    row_mult = 8 * max(1, 4 // itemsize)
    c_pad = ((num_classes + row_mult - 1) // row_mult) * row_mult
    # Per-token bytes of the two streamed, double-buffered inputs:
    #   logits tile (c_pad sublanes x itemsize) + int32 targets (8 sublanes).
    per_token = 2 * (c_pad * itemsize + 8 * 4)
    budget = 8 * 1024 * 1024                       # safe inside v5e 16 MiB scoped
    tl = (budget // per_token) // 128 * 128
    tl = min(tl, 65536)
    if n_tokens >= 8 * 4096:
        # Enough work: keep >= 8 tiles so the "parallel" grid axis balances
        # across both v7x TensorCores without tiles shrinking below 4096 lanes.
        tl = min(tl, (pl.cdiv(n_tokens, 8) // 128) * 128)
    tl = min(tl, pl.cdiv(n_tokens, 128) * 128)     # don't over-allocate tiny N
    tl = max(tl, 128)

    vmem = per_token * tl                          # streamed inputs (padded, x2)
    vmem += 2 * (c_pad * 128 * 4)                  # resident alpha (lane-padded)
    vmem += 2 * (8 * 128 * 4)                      # (1, 2, 1) output block
    vmem_limit = min(32 << 20, max(16 << 20, int(vmem) + (4 << 20)))
    return int(tl), int(vmem_limit)


def focal_loss(logits, targets, alpha=None, *, gamma=2.0, ignore_index=-100,
               reduction="mean", class_major=False):
    """Pallas TPU focal loss.

    logits : [B, S, C] or [N, C] (any float dtype); with class_major=True,
             already class-major [C, N] (preferred: no transpose pass at all).
    targets: [B, S] or [N] integer class ids (ignore_index = padding).
    alpha  : [C] per-class weights, a scalar (applied to every class,
             i.e. a pure loss scale — matches the reference module), or None.
    reduction: 'mean' (default) or 'sum'.
    """
    if class_major:
        C, N = logits.shape
        logits_cm = logits
        targets_flat = targets.reshape(-1)
    else:
        if logits.ndim == 3:
            logits = logits.reshape(-1, logits.shape[-1])
            targets = targets.reshape(-1)
        N, C = logits.shape
        targets_flat = targets.reshape(-1)
        # Class-major view for lane-dense tiles.  allow_input_fusion below lets
        # XLA fuse this transpose into the Pallas operand instead of running a
        # separate minor-dim-C HBM transpose pass.
        logits_cm = logits.T

    if alpha is None:
        alpha_col = jnp.ones((C, 1), jnp.float32)
    else:
        a = jnp.asarray(alpha, jnp.float32)
        if a.ndim == 0:
            a = jnp.full((C,), a, jnp.float32)
        alpha_col = a.reshape(C, 1)

    targets_row = targets_flat.astype(jnp.int32).reshape(1, N)

    itemsize = jnp.dtype(logits_cm.dtype).itemsize
    TL, vmem_limit = _pick_tile_and_vmem(N, C, itemsize)
    n_tiles = pl.cdiv(N, TL)

    kernel = functools.partial(_focal_loss_kernel,
                               gamma=float(gamma),
                               ignore_index=int(ignore_index),
                               n_tokens=int(N),
                               tile_lanes=int(TL))

    partials = pl.pallas_call(
        kernel,
        out_shape=jax.ShapeDtypeStruct((n_tiles, 2, 1), jnp.float32),
        grid_spec=pltpu.PrefetchScalarGridSpec(
            num_scalar_prefetch=0,
            grid=(n_tiles,),
            in_specs=[
                pl.BlockSpec((C, TL), lambda i: (0, i)),    # logits tile (streamed)
                pl.BlockSpec((1, TL), lambda i: (0, i)),    # targets tile (streamed)
                pl.BlockSpec((C, 1), lambda i: (0, 0)),     # alpha (resident)
            ],
            out_specs=pl.BlockSpec((1, 2, 1), lambda i: (i, 0, 0)),
        ),
        compiler_params=pltpu.CompilerParams(
            # each step writes its own partial -> fully parallel (both v7x TCs)
            dimension_semantics=("parallel",),
            vmem_limit_bytes=vmem_limit,
            allow_input_fusion=[True, False, False],
        ),
        cost_estimate=pl.CostEstimate(
            flops=int(N) * (12 * C + 30),
            transcendentals=int(N) * (C + 2),
            bytes_accessed=int(N) * (C * itemsize + 4) + C * 4 + int(n_tiles) * 8,
        ),
    )(logits_cm, targets_row, alpha_col)

    total = jnp.sum(partials[:, 0, 0])
    count = jnp.sum(partials[:, 1, 0])
    if reduction == "sum":
        return total
    if reduction == "none":
        # TODO(synk): reduction='none' returns a boolean-mask-compacted per-token
        # loss vector (data-dependent shape); not implemented as a Pallas kernel.
        raise NotImplementedError("reduction='none' is not supported")
    # 'mean': zero valid tokens yields NaN (total / 0), matching torch's
    # mean over an empty tensor.
    return total / count


def _reference_focal_loss(logits, targets, alpha, gamma, ignore_index):
    """Pure-JAX reference matching the PyTorch module (reduction='mean')."""
    if logits.ndim == 3:
        logits = logits.reshape(-1, logits.shape[-1])
        targets = targets.reshape(-1)
    valid = targets != ignore_index
    t_safe = jnp.where(valid, targets, 0)
    logp = jax.nn.log_softmax(logits.astype(jnp.float32), axis=-1)
    log_pt = jnp.take_along_axis(logp, t_safe[:, None], axis=1)[:, 0]
    pt = jnp.exp(log_pt)
    focal_w = (1.0 - pt) ** gamma
    alpha_w = alpha[t_safe]
    loss = jnp.where(valid, -focal_w * alpha_w * log_pt, 0.0)
    return jnp.sum(loss) / jnp.sum(valid.astype(jnp.float32))


if __name__ == "__main__":
    # small NER-like shapes: batch=2, seq=8, num_classes=9
    B, S, C = 2, 8, 9
    gamma = 2.0
    ignore_index = -100

    key = jax.random.PRNGKey(0)
    k1, k2, k3 = jax.random.split(key, 3)

    logits = jax.random.normal(k1, (B, S, C), dtype=jnp.float32)
    targets = jax.random.randint(k2, (B, S), 0, C, dtype=jnp.int32)
    # sprinkle in some padding tokens (ignore_index)
    pad_mask = jax.random.bernoulli(k3, 0.25, (B, S))
    targets = jnp.where(pad_mask, ignore_index, targets)

    # deterministic per-class alpha weights
    alpha = jnp.linspace(0.5, 1.5, C, dtype=jnp.float32)

    # default path: token-major [B, S, C] logits
    loss = focal_loss(logits, targets, alpha, gamma=gamma,
                      ignore_index=ignore_index)
    loss = jax.block_until_ready(loss)

    # producer-side class-major path (no transpose anywhere)
    logits_cm = logits.reshape(-1, C).T
    loss_cm = focal_loss(logits_cm, targets, alpha, gamma=gamma,
                         ignore_index=ignore_index, class_major=True)
    loss_cm = jax.block_until_ready(loss_cm)

    ref = _reference_focal_loss(logits, targets, alpha, gamma, ignore_index)
    assert jnp.allclose(loss, ref, rtol=1e-5, atol=1e-5), (loss, ref)
    assert jnp.allclose(loss_cm, ref, rtol=1e-5, atol=1e-5), (loss_cm, ref)

    print("KERNEL_OK")
</pallas_src>

<mosaic_0001>
module attributes {stable_mosaic.version = 11 : i64} {
  func.func @_focal_loss_kernel(%arg0: i32, %arg1: memref<9x128xf32, #tpu.memory_space<vmem>>, %arg2: memref<1x128xi32, #tpu.memory_space<vmem>>, %arg3: memref<9x1xf32, #tpu.memory_space<vmem>>, %arg4: memref<1x2x1xf32, #tpu.memory_space<vmem>>) attributes {dimension_semantics = [#tpu.dimension_semantics<parallel>], iteration_bounds = array<i64: 1>, scalar_prefetch = 0 : i64, scratch_operands = 0 : i64, tpu.core_type = #tpu.core_type<tc>, window_params = [{transform_indices = @transform_0, window_bounds = array<i64: 9, 128>}, {transform_indices = @transform_1, window_bounds = array<i64: 1, 128>}, {pipeline_mode = #tpu.pipeline_mode<synchronous>, transform_indices = @transform_2, window_bounds = array<i64: 9, 1>}, {transform_indices = @transform_3, window_bounds = array<i64: 1, 2, 1>}]} {
    %c0 = arith.constant 0 : index
    %c0_0 = arith.constant 0 : index
    %0 = vector.load %arg1[%c0, %c0_0] : memref<9x128xf32, #tpu.memory_space<vmem>>, vector<9x128xf32>
    %c0_1 = arith.constant 0 : index
    %c0_2 = arith.constant 0 : index
    %1 = vector.load %arg2[%c0_1, %c0_2] : memref<1x128xi32, #tpu.memory_space<vmem>>, vector<1x128xi32>
    %c0_3 = arith.constant 0 : index
    %c0_4 = arith.constant 0 : index
    %2 = vector.load %arg3[%c0_3, %c0_4] : memref<9x1xf32, #tpu.memory_space<vmem>>, vector<9x1xf32>
    %c-100_i32 = arith.constant -100 : i32
    %3 = vector.broadcast %c-100_i32 : i32 to vector<1x128xi32>
    %4 = arith.cmpi ne, %1, %3 : vector<1x128xi32>
    %5 = tpu.iota {dimensions = array<i32: 1>} : vector<1x128xi32>
    %c128_i32 = arith.constant 128 : i32
    %6 = arith.muli %arg0, %c128_i32 : i32
    %c16_i32 = arith.constant 16 : i32
    %7 = arith.subi %c16_i32, %6 : i32
    %8 = vector.broadcast %7 : i32 to vector<1x128xi32>
    %9 = arith.cmpi slt, %5, %8 : vector<1x128xi32>
    %10 = arith.andi %4, %9 : vector<1x128xi1>
    %11 = tpu.iota {dimensions = array<i32: 0>} : vector<9x128xi32>
    %12 = vector.broadcast %1 : vector<1x128xi32> to vector<9x128xi32>
    %13 = arith.cmpi eq, %11, %12 : vector<9x128xi32>
    %cst = arith.constant dense<0xFF800000> : vector<128xf32>
    %14 = vector.multi_reduction <maximumf>, %0, %cst [0] : vector<9x128xf32> to vector<128xf32>
    %15 = vector.shape_cast %14 : vector<128xf32> to vector<1x128xf32>
    %16 = vector.broadcast %15 : vector<1x128xf32> to vector<9x128xf32>
    %17 = arith.subf %0, %16 : vector<9x128xf32>
    %18 = math.exp %17 : vector<9x128xf32>
    %cst_5 = arith.constant dense<0.000000e+00> : vector<128xf32>
    %19 = vector.multi_reduction <add>, %18, %cst_5 [0] : vector<9x128xf32> to vector<128xf32>
    %20 = vector.shape_cast %19 : vector<128xf32> to vector<1x128xf32>
    %21 = math.log %20 : vector<1x128xf32>
    %22 = arith.addf %15, %21 : vector<1x128xf32>
    %cst_6 = arith.constant 0.000000e+00 : f32
    %23 = vector.broadcast %cst_6 : f32 to vector<9x128xf32>
    %24 = arith.select %13, %0, %23 : vector<9x128xi1>, vector<9x128xf32>
    %cst_7 = arith.constant dense<0.000000e+00> : vector<128xf32>
    %25 = vector.multi_reduction <add>, %24, %cst_7 [0] : vector<9x128xf32> to vector<128xf32>
    %26 = vector.shape_cast %25 : vector<128xf32> to vector<1x128xf32>
    %cst_8 = arith.constant 0.000000e+00 : f32
    %27 = vector.shape_cast %2 : vector<9x1xf32> to vector<9x1xf32>
    %28 = vector.broadcast %27 : vector<9x1xf32> to vector<9x128xf32>
    %29 = vector.broadcast %cst_8 : f32 to vector<9x128xf32>
    %30 = arith.select %13, %28, %29 : vector<9x128xi1>, vector<9x128xf32>
    %cst_9 = arith.constant dense<0.000000e+00> : vector<128xf32>
    %31 = vector.multi_reduction <add>, %30, %cst_9 [0] : vector<9x128xf32> to vector<128xf32>
    %32 = vector.shape_cast %31 : vector<128xf32> to vector<1x128xf32>
    %33 = arith.subf %26, %22 : vector<1x128xf32>
    %34 = math.exp %33 : vector<1x128xf32>
    %cst_10 = arith.constant 1.000000e+00 : f32
    %35 = vector.broadcast %cst_10 : f32 to vector<1x128xf32>
    %36 = arith.subf %35, %34 : vector<1x128xf32>
    %37 = arith.mulf %36, %36 : vector<1x128xf32>
    %38 = arith.mulf %37, %32 : vector<1x128xf32>
    %cst_11 = arith.constant 0.000000e+00 : f32
    %39 = vector.broadcast %cst_11 : f32 to vector<1x128xf32>
    %40 = arith.subf %39, %33 : vector<1x128xf32>
    %41 = arith.mulf %38, %40 : vector<1x128xf32>
    %cst_12 = arith.constant 0.000000e+00 : f32
    %42 = vector.broadcast %cst_12 : f32 to vector<1x128xf32>
    %43 = arith.select %10, %41, %42 : vector<1x128xi1>, vector<1x128xf32>
    %44 = arith.extui %10 : vector<1x128xi1> to vector<1x128xi32>
    %45 = arith.sitofp %44 : vector<1x128xi32> to vector<1x128xf32>
    %46 = tpu.concatenate %43, %45 in 0 : vector<1x128xf32>, vector<1x128xf32> -> vector<2x128xf32>
    %cst_13 = arith.constant dense<0.000000e+00> : vector<2xf32>
    %47 = vector.multi_reduction <add>, %46, %cst_13 [1] : vector<2x128xf32> to vector<2xf32>
    %48 = vector.shape_cast %47 : vector<2xf32> to vector<2x1xf32>
    %49 = vector.shape_cast %48 : vector<2x1xf32> to vector<1x2x1xf32>
    %c0_14 = arith.constant 0 : index
    %c0_15 = arith.constant 0 : index
    %c0_16 = arith.constant 0 : index
    %50 = vector.load %arg4[%c0_14, %c0_15, %c0_16] : memref<1x2x1xf32, #tpu.memory_space<vmem>>, vector<1x2x1xf32>
    tpu.vector_store %arg4[%c0_14, %c0_15, %c0_16], %49 {strides = array<i32>} : memref<1x2x1xf32, #tpu.memory_space<vmem>>, vector<1x2x1xf32>,
    return
  }
  func.func @transform_0(%arg0: i32) -> (i32, i32) {
    %c0_i32 = arith.constant 0 : i32
    %c0_i32_0 = arith.constant 0 : i32
    return %c0_i32, %arg0 : i32, i32
  }
  func.func @transform_1(%arg0: i32) -> (i32, i32) {
    %c0_i32 = arith.constant 0 : i32
    %c0_i32_0 = arith.constant 0 : i32
    return %c0_i32, %arg0 : i32, i32
  }
  func.func @transform_2(%arg0: i32) -> (i32, i32) {
    %c0_i32 = arith.constant 0 : i32
    %c0_i32_0 = arith.constant 0 : i32
    %c0_i32_1 = arith.constant 0 : i32
    return %c0_i32, %c0_i32_0 : i32, i32
  }
  func.func @transform_3(%arg0: i32) -> (i32, i32, i32) {
    %c0_i32 = arith.constant 0 : i32
    %c0_i32_0 = arith.constant 0 : i32
    %c0_i32_1 = arith.constant 0 : i32
    return %arg0, %c0_i32, %c0_i32_0 : i32, i32, i32
  }
}

</mosaic_0001>

<llo_original>
// kernel: tpu_custom_call.1
$region0: #{tpu_custom_call.1}
  #allocation0 [shape = 'u32[]', space=smem, size = 0x4, offset = 0x4, fixed_abs, tag = 'smem constant byte address 0x4 - core index']
  #allocation1 [shape = 'u32[72,128]{1,0:T(1,128)}', space=vmem, size = 0x9000, scoped, tag = 'internal scratch']
  %s0 = inlined_call_operand.vmem [shape: f32[9,16], index: 0, kind: input, shape index: {}]
  %s1 = inlined_call_operand.vmem [shape: s32[1,16], index: 1, kind: input, shape index: {}]
  %s2 = inlined_call_operand.vmem [shape: f32[9,1], index: 2, kind: input, shape index: {}]
  %s3 = inlined_call_operand.vmem [shape: f32[1,2,1], index: 3, kind: output, shape index: {}]
  %s4 = sld [smem:[#allocation0]]
  $region22: #{tpu_custom_call.1} parent=0
    _
  %s6 = ssub.s32 1, %s4
  %s7 = scalar_select 0, %s6, %s4
  // Predicated region
  $region2: #{tpu_custom_call.1} parent=0 // pred_check
    _
  $region3: #{tpu_custom_call.1} parent=0 // pred_check_branch
    %9 = sbr.rel (0) target = $region5
  $region4: #{tpu_custom_call.1} parent=0 // pred_region
    _
  $region5: #{tpu_custom_call.1} parent=0 // pred_fallthru
    _
  // Predicated region
  $region6: #{tpu_custom_call.1} parent=0 // pred_check
    _
  $region7: #{tpu_custom_call.1} parent=0 // pred_check_branch
    %11 = sbr.rel (0) target = $region9
  $region8: #{tpu_custom_call.1} parent=0 // pred_region
    _
  $region9: #{tpu_custom_call.1} parent=0 // pred_fallthru
    _
  // Predicated region
  $region10: #{tpu_custom_call.1} parent=0 // pred_check
    _
  $region11: #{tpu_custom_call.1} parent=0 // pred_check_branch
    %13 = sbr.rel (0) target = $region13
  $region12: #{tpu_custom_call.1} parent=0 // pred_region
    _
  $region13: #{tpu_custom_call.1} parent=0 // pred_fallthru
    _
  %v14 = vld [vmem:[%s0] sm:$0xff]
  %v15 = vld [vmem:[%s0 + $0x8] sm:$0x1]
  %v16 = vld [vmem:[%s1] sm:$0x1]
  %v17 = vld [vmem:[%s2] sm:$0xff]
  %v18 = vld [vmem:[%s2 + $0x8] sm:$0x1]
  %vm19 = vcmp.ne.s32.totalorder %v16, 4294967196
  %v20 = vlaneseq
  %v21 = vand.u32 %v20, 127
  %s22 = smul.u32 0, 128
  %s23 = ssub.s32 16, %s22
  %v24 = vstv %s23
  %vm25 = vcmp.lt.s32.totalorder %v21, %v24
  %vm26 = vmand %vm19, %vm25
  %v27 = vlaneseq
  %v28 = vshrl.u32 %v27, 7
  %v29 = vadd.s32 %v28, 8
  %v30 = vperm.slane %v16, 0
  %vm31 = vcmp.eq.s32.totalorder %v28, %v30
  %vm32 = vcmp.eq.s32.totalorder %v29, %v30
  %vm33 = vcmask 1040384
  %v34 = vsel %vm33, %v15, -inf
  %v35 = vmax.f32 %v14, %v34
  %v36 = vrot.slane %v35, 4
  %v37 = vmax.f32 %v35, %v36
  %v38 = vrot.slane %v37, 2
  %v39 = vmax.f32 %v37, %v38
  %v40 = vrot.slane %v39, 1
  %v41 = vmax.f32 %v39, %v40
  %v42 = vsub.f32 %v14, %v41
  %v43 = vsub.f32 %v15, %v41
  %v44 = vmul.f32 %v42, 1.442695
  %v45 = vpow.pop %v44
  %v46 = vmul.f32 %v43, 1.442695
  %v47 = vpow.pop %v46
  %v48 = vsel %vm33, %v47, 0.0
  %v49 = vadd.f32 %v45, %v48
  %v50 = vrot.slane %v49, 4
  %v51 = vadd.f32 %v49, %v50
  %v52 = vrot.slane %v51, 2
  %v53 = vadd.f32 %v51, %v52
  %v54 = vrot.slane %v53, 1
  %v55 = vadd.f32 %v53, %v54
  %v56 = vlog2.pop %v55
  %v57 = vmul.f32 %v56, 0.6931472
  %v58 = vadd.f32 %v41, %v57
  %v59 = vsel %vm31, %v14, 0.0
  %v60 = vsel %vm32, %v15, 0.0
  %v61 = vsel %vm33, %v60, 0.0
  %v62 = vadd.f32 %v59, %v61
  %v63 = vrot.slane %v62, 4
  %v64 = vadd.f32 %v62, %v63
  %v65 = vrot.slane %v64, 2
  %v66 = vadd.f32 %v64, %v65
  %v67 = vrot.slane %v66, 1
  %v68 = vadd.f32 %v66, %v67
  %70 = vset.pattern.permute.xlu0 0
  %71 = vperm.xlu0 %70, %v17
  %v72 = vpop.permute.xlu0 %71
  %75 = vset.pattern.permute.xlu0 0
  %76 = vperm.xlu0 %75, %v18
  %v77 = vpop.permute.xlu0 %76
  %v79 = vsel %vm31, %v72, 0.0
  %v80 = vsel %vm32, %v77, 0.0
  %v81 = vsel %vm33, %v80, 0.0
  %v82 = vadd.f32 %v79, %v81
  %v83 = vrot.slane %v82, 4
  %v84 = vadd.f32 %v82, %v83
  %v85 = vrot.slane %v84, 2
  %v86 = vadd.f32 %v84, %v85
  %v87 = vrot.slane %v86, 1
  %v88 = vadd.f32 %v86, %v87
  %v89 = vsub.f32 %v68, %v58
  %v90 = vmul.f32 %v89, 1.442695
  %v91 = vpow.pop %v90
  %v92 = vsub.f32 1.0, %v91
  %v93 = vmul.f32 %v92, %v92
  %v94 = vmul.f32 %v93, %v88
  %v95 = vsub.f32 0.0, %v89
  %v96 = vmul.f32 %v94, %v95
  %v97 = vsel %vm26, %v96, 0.0
  %v98 = vsel %vm26, 1, 0
  %v99 = vcvt.s32.f32 %v98
  %v101 = vperm.slane %v99, 0
  %v103 = vsel %vm33, %v97, %v101
  %vm104 = vcmask 1041408
  %v105 = vsel %vm104, %v103, 0.0
  %106 = vadd.xlane.f32.xlu0 %v105
  %v107 = vpop.xlane.xlu0 %106
  %vm108 = vcmask 1024
  %109 = vst.msk [vmem:[%s3] sm:$0x3] %vm108, %v107
  // Predicated region
  $region14: #{tpu_custom_call.1} parent=0 // pred_check
    _
  $region15: #{tpu_custom_call.1} parent=0 // pred_check_branch
    %111 = sbr.rel (0) target = $region17
  $region16: #{tpu_custom_call.1} parent=0 // pred_region
    _
  $region17: #{tpu_custom_call.1} parent=0 // pred_fallthru
    _
  // Predicated region
  $region18: #{tpu_custom_call.1} parent=0 // pred_check
    _
  $region19: #{tpu_custom_call.1} parent=0 // pred_check_branch
    %113 = sbr.rel (0) target = $region21
  $region20: #{tpu_custom_call.1} parent=0 // pred_region
    _
  $region21: #{tpu_custom_call.1} parent=0 // pred_fallthru
    _

</llo_original>
